<compile_context>
chip_gen: v7x
topology: tpu7x:2x2x1
jax: 0.10.0
libtpu: 0.0.40
codegen_flags: <defaults>
</compile_context>

<pallas_src>
import jax
import jax.numpy as jnp
from jax.experimental import pallas as pl
from jax.experimental.pallas import tpu as pltpu


def _with_noise_kernel(x_ref, n_ref, w_ref, o_ref):
    # (bt, tl) elementwise FMA; w_ref is a (1, tl) row that broadcasts over rows.
    o_ref[...] = x_ref[...] + w_ref[...] * n_ref[...]


def _pick_tiles(B, L, itemsize, target_tile_bytes=4 << 20):
    """Pick (bt, tl) block dims for a (B, L) array.

    Block dims must be divisible by (8, 128) or equal the full extent.  We pick
    the largest exact divisors that keep a single tile under ~target_tile_bytes.
    """
    # Lane-axis tile: largest multiple-of-128 divisor of L under the budget.
    lane_cap = max(128, target_tile_bytes // (8 * itemsize))
    tl = L
    if L % 128 == 0 and L > lane_cap:
        tl = 128
        for cand in range(128, min(L, lane_cap) + 1, 128):
            if L % cand == 0:
                tl = cand
    # Batch-axis tile: largest multiple-of-8 divisor of B under the budget.
    rows_cap = max(1, target_tile_bytes // (tl * itemsize))
    bt = B
    if B % 8 == 0 and B > rows_cap:
        bt = 8
        for cand in range(8, min(B, max(8, rows_cap)) + 1, 8):
            if B % cand == 0:
                bt = cand
    return bt, tl


class WithNoise1d:
    """JAX/Pallas equivalent of torch_utils.WithNoise1d."""

    def __init__(self, num_features):
        assert isinstance(num_features, int)
        self.num_features = num_features
        # nn.Parameter(0.01 * ones) -> plain array here (no training loop).
        self.weights = 0.01 * jnp.ones((num_features,), dtype=jnp.float32)

    def __call__(self, x, key=None):
        assert x.ndim == 3
        B, F, N = x.shape
        assert F == self.num_features, (
            f"WithNoise1d: expected {self.num_features} features, got {F}"
        )
        if key is None:
            key = jax.random.PRNGKey(0)

        L = F * N
        dtype = x.dtype
        itemsize = jnp.dtype(dtype).itemsize

        # Lane-dense layout: flatten the (F, N) slab into one row of L lanes.
        x2 = x.reshape(B, L)
        # Per-element N(0,1) noise (matches torch.randn_like semantics).
        noise = jax.random.normal(key, (B, L), dtype=dtype)
        # Pre-expand the per-feature weight into a lane-dense (1, L) row once.
        w_row = jnp.repeat(self.weights.astype(dtype), N).reshape(1, L)

        bt, tl = _pick_tiles(B, L, itemsize)
        grid = (B // bt, L // tl)

        out2 = pl.pallas_call(
            _with_noise_kernel,
            out_shape=jax.ShapeDtypeStruct((B, L), dtype),
            grid_spec=pltpu.PrefetchScalarGridSpec(
                num_scalar_prefetch=0,
                grid=grid,
                in_specs=[
                    pl.BlockSpec((bt, tl), lambda b, l: (b, l)),
                    pl.BlockSpec((bt, tl), lambda b, l: (b, l)),
                    pl.BlockSpec((1, tl), lambda b, l: (0, l)),
                ],
                out_specs=pl.BlockSpec((bt, tl), lambda b, l: (b, l)),
            ),
            compiler_params=pltpu.CompilerParams(
                dimension_semantics=("parallel", "parallel"),
                vmem_limit_bytes=48 << 20,
            ),
        )(x2, noise, w_row)

        return out2.reshape(B, F, N)


if __name__ == "__main__":
    key = jax.random.PRNGKey(0)
    kx, kn = jax.random.split(key)

    B, F, N = 2, 4, 8
    x = jax.random.normal(kx, (B, F, N), dtype=jnp.float32)

    module = WithNoise1d(F)
    y = module(x, key=kn)
    y = jax.block_until_ready(y)

    assert y.shape == x.shape
    assert bool(jnp.all(jnp.isfinite(y)))
    # Noise scale is 0.01 * N(0,1): output stays close to x but is not equal to it.
    assert bool(jnp.max(jnp.abs(y - x)) < 0.1)
    assert bool(jnp.any(jnp.abs(y - x) > 0.0))
    # Cross-check against the pure-JAX reference of the module's forward.
    noise_ref = jax.random.normal(kn, (B, F * N), dtype=x.dtype).reshape(B, F, N)
    ref = x + module.weights.reshape(1, F, 1) * noise_ref
    assert bool(jnp.max(jnp.abs(y - ref)) < 1e-6)
    print("KERNEL_OK")
</pallas_src>

<mosaic_0001>
module attributes {stable_mosaic.version = 11 : i64} {
  func.func @_with_noise_kernel(%arg0: i32, %arg1: i32, %arg2: memref<2x32xf32, #tpu.memory_space<vmem>>, %arg3: memref<2x32xf32, #tpu.memory_space<vmem>>, %arg4: memref<1x32xf32, #tpu.memory_space<vmem>>, %arg5: memref<2x32xf32, #tpu.memory_space<vmem>>) attributes {dimension_semantics = [#tpu.dimension_semantics<parallel>, #tpu.dimension_semantics<parallel>], iteration_bounds = array<i64: 1, 1>, scalar_prefetch = 0 : i64, scratch_operands = 0 : i64, tpu.core_type = #tpu.core_type<tc>, window_params = [{transform_indices = @transform_0, window_bounds = array<i64: 2, 32>}, {transform_indices = @transform_1, window_bounds = array<i64: 2, 32>}, {transform_indices = @transform_2, window_bounds = array<i64: 1, 32>}, {transform_indices = @transform_3, window_bounds = array<i64: 2, 32>}]} {
    %c0 = arith.constant 0 : index
    %c0_0 = arith.constant 0 : index
    %0 = vector.load %arg2[%c0, %c0_0] : memref<2x32xf32, #tpu.memory_space<vmem>>, vector<2x32xf32>
    %c0_1 = arith.constant 0 : index
    %c0_2 = arith.constant 0 : index
    %1 = vector.load %arg4[%c0_1, %c0_2] : memref<1x32xf32, #tpu.memory_space<vmem>>, vector<1x32xf32>
    %c0_3 = arith.constant 0 : index
    %c0_4 = arith.constant 0 : index
    %2 = vector.load %arg3[%c0_3, %c0_4] : memref<2x32xf32, #tpu.memory_space<vmem>>, vector<2x32xf32>
    %3 = vector.broadcast %1 : vector<1x32xf32> to vector<2x32xf32>
    %4 = arith.mulf %3, %2 : vector<2x32xf32>
    %5 = arith.addf %0, %4 : vector<2x32xf32>
    %c0_5 = arith.constant 0 : index
    %c0_6 = arith.constant 0 : index
    %6 = vector.load %arg5[%c0_5, %c0_6] : memref<2x32xf32, #tpu.memory_space<vmem>>, vector<2x32xf32>
    tpu.vector_store %arg5[%c0_5, %c0_6], %5 {strides = array<i32>} : memref<2x32xf32, #tpu.memory_space<vmem>>, vector<2x32xf32>,
    return
  }
  func.func @transform_0(%arg0: i32, %arg1: i32) -> (i32, i32) {
    %c0_i32 = arith.constant 0 : i32
    return %arg0, %arg1 : i32, i32
  }
  func.func @transform_1(%arg0: i32, %arg1: i32) -> (i32, i32) {
    %c0_i32 = arith.constant 0 : i32
    return %arg0, %arg1 : i32, i32
  }
  func.func @transform_2(%arg0: i32, %arg1: i32) -> (i32, i32) {
    %c0_i32 = arith.constant 0 : i32
    %c0_i32_0 = arith.constant 0 : i32
    return %c0_i32, %arg1 : i32, i32
  }
  func.func @transform_3(%arg0: i32, %arg1: i32) -> (i32, i32) {
    %c0_i32 = arith.constant 0 : i32
    return %arg0, %arg1 : i32, i32
  }
}

</mosaic_0001>

<llo_original>
// kernel: tpu_custom_call.1
$region0: #{tpu_custom_call.1}
  #allocation0 [shape = 'u32[]', space=smem, size = 0x4, offset = 0x4, fixed_abs, tag = 'smem constant byte address 0x4 - core index']
  #allocation1 [shape = 'u32[144,128]{1,0:T(1,128)}', space=vmem, size = 0x12000, scoped, tag = 'internal scratch']
  %s0 = inlined_call_operand.hbm [shape: f32[2,32], index: 0, kind: input, shape index: {}]
  %s1 = inlined_call_operand.vmem [shape: f32[2,32], index: 1, kind: input, shape index: {}]
  %s2 = inlined_call_operand.vmem [shape: f32[1,32], index: 2, kind: input, shape index: {}]
  %s3 = inlined_call_operand.hbm [shape: f32[2,32], index: 3, kind: output, shape index: {}]
  %s4 = sld [smem:[#allocation0]]
  $region26: #{tpu_custom_call.1} parent=0
    _
  %s6 = ssub.s32 1, %s4
  %s7 = scalar_select 0, %s6, %s4
  $region1: #{tpu_custom_call.1} parent=0
    #allocation2 [shape = 'u8[1024]{0}', space=vmem, size = 0x400, scoped, tag = 'input window, operand 0, single buffered']
    #allocation3 [shape = 's32[1]{0}', space=sflag, size = 0x4, scoped, tag = 'scoped memory for tpu_custom_call.1']
    #allocation4 [shape = 's32[1]{0}', space=sflag, size = 0x4, scoped, tag = 'scoped memory for tpu_custom_call.1']
    #allocation5 [shape = 'u8[1024]{0}', space=vmem, size = 0x400, scoped, tag = 'output window, operand 0, single buffered']
    %8 = vsyncpa [#allocation3], 0
    %9 = vsyncpa [#allocation4], 0
    // Predicated region
    $region2: #{tpu_custom_call.1} parent=1 // pred_check
      _
    $region3: #{tpu_custom_call.1} parent=1 // pred_check_branch
      %11 = sbr.rel (0) target = $region5
    $region4: #{tpu_custom_call.1} parent=1 // pred_region
      %s13 = ssub.s32 32, 32
      %14 = vsyncadd [#allocation3], %s13
      %s16 = sshll.u32 [#allocation2], 4
      %s17 = int_to_ptr.vmem [resolvable:$true] %s16
      %19 = dma.hbm_to_vmem [thread:$0]  %s0, 32, %s17, [#allocation3]
    $region5: #{tpu_custom_call.1} parent=1 // pred_fallthru
      _
    // Predicated region
    $region6: #{tpu_custom_call.1} parent=1 // pred_check
      _
    $region7: #{tpu_custom_call.1} parent=1 // pred_check_branch
      %21 = sbr.rel (0) target = $region9
    $region8: #{tpu_custom_call.1} parent=1 // pred_region
      _
    $region9: #{tpu_custom_call.1} parent=1 // pred_fallthru
      _
    // Predicated region
    $region10: #{tpu_custom_call.1} parent=1 // pred_check
      _
    $region11: #{tpu_custom_call.1} parent=1 // pred_check_branch
      %23 = sbr.rel (0) target = $region13
    $region12: #{tpu_custom_call.1} parent=1 // pred_region
      _
    $region13: #{tpu_custom_call.1} parent=1 // pred_fallthru
      _
    // Predicated region
    $region14: #{tpu_custom_call.1} parent=1 // pred_check
      _
    $region15: #{tpu_custom_call.1} parent=1 // pred_check_branch
      %25 = sbr.rel (0) target = $region17
    $region16: #{tpu_custom_call.1} parent=1 // pred_region
      %26 = dma.done [#allocation3], 32
    $region17: #{tpu_custom_call.1} parent=1 // pred_fallthru
      _
    %v27 = vld [vmem:[#allocation2] sm:$0x3]
    %v28 = vld [vmem:[%s2] sm:$0x1]
    %v29 = vld [vmem:[%s1] sm:$0x3]
    %v31 = vlaneseq
    %v32 = vshrl.u32 %v31, 7
    %v33 = vsub.s32 0, %v32
    %v34 = vrot.slane %v28, %v33
    %v36 = vmul.f32 %v34, %v29
    %v37 = vadd.f32 %v27, %v36
    %vm38 = vcmask 254976
    %39 = vst.msk [vmem:[#allocation5] sm:$0x3] %vm38, %v37
    // Predicated region
    $region18: #{tpu_custom_call.1} parent=1 // pred_check
      _
    $region19: #{tpu_custom_call.1} parent=1 // pred_check_branch
      %41 = sbr.rel (0) target = $region21
    $region20: #{tpu_custom_call.1} parent=1 // pred_region
      %s43 = ssub.s32 32, 32
      %44 = vsyncadd [#allocation4], %s43
      %s46 = sshll.u32 [#allocation5], 4
      %s47 = int_to_ptr.vmem [resolvable:$true] %s46
      %49 = dma.vmem_to_hbm [thread:$0]  %s47, 32, %s3, [#allocation4]
    $region21: #{tpu_custom_call.1} parent=1 // pred_fallthru
      _
    // Predicated region
    $region22: #{tpu_custom_call.1} parent=1 // pred_check
      _
    $region23: #{tpu_custom_call.1} parent=1 // pred_check_branch
      %51 = sbr.rel (0) target = $region25
    $region24: #{tpu_custom_call.1} parent=1 // pred_region
      %52 = dma.done [#allocation4], 32
    $region25: #{tpu_custom_call.1} parent=1 // pred_fallthru
      _
    %53 = vsyncpa [#allocation3], 1
    %54 = vsyncpa [#allocation4], 1

</llo_original>
